<compile_context>
chip_gen: v7x
topology: tpu7x:2x2x1
jax: 0.10.0
libtpu: 0.0.40
codegen_flags: <defaults>
</compile_context>

<pallas_src>
import functools

import jax
import jax.numpy as jnp
import numpy as np
from jax.experimental import pallas as pl
from jax.experimental.pallas import tpu as pltpu


def _stats_kernel(x_ref, w_ref, sum_ref, sq_ref, *, L, TS):
    """Pass 1: per-tile partial sum / sum-of-squares of y = W @ relu(x)."""
    x = jnp.maximum(x_ref[...].astype(jnp.float32), 0.0)      # ReLU (VPU, f32)
    if L % TS != 0:                      # zero the padded tail columns
        col = pl.program_id(0) * TS + jax.lax.broadcasted_iota(
            jnp.int32, (1, TS), 1)
        x = jnp.where(col < L, x, 0.0)
    # Fused 1x1 convs: (C_out, 2*C_in) @ (2*C_in, TS) on the MXU.
    y = jnp.dot(w_ref[...], x, preferred_element_type=jnp.float32)
    sum_ref[0] = jnp.sum(y, axis=1, keepdims=True)
    sq_ref[0] = jnp.sum(y * y, axis=1, keepdims=True)


def _norm_kernel(x_ref, w_ref, shift_ref, o_ref):
    """Pass 2: y = (scale-folded W) @ relu(x) + shift.

    Padded tail columns of the last tile compute garbage values, but those
    columns are out of bounds of the output array and dropped on writeback;
    the matmul keeps garbage column-local, so valid columns are unaffected.
    """
    x = jnp.maximum(x_ref[...].astype(jnp.float32), 0.0)
    y = jnp.dot(w_ref[...], x, preferred_element_type=jnp.float32)
    o_ref[...] = (y + shift_ref[...]).astype(o_ref.dtype)


def _pick_spatial_tile(L, per_col_bytes, *, single_copy_budget=8 << 20):
    """Lane tile: full extent when it already fits, else the largest multiple
    of 128 whose (input + output) tile pair stays under `single_copy_budget`
    bytes -- i.e. <= 2x that once Pallas double-buffers, well inside the
    explicit 32 MiB vmem_limit_bytes on every TPU generation."""
    max_cols = max(128, (single_copy_budget // per_col_bytes) // 128 * 128)
    return L if L <= max_cols else max_cols


def factorized_reduce(x_nchw, w0, w1, gamma, beta, *, eps=1e-5,
                      spatial_tile=None):
    """NAS-Bench-201 FactorizedReduce forward (stride=2, training-mode BN).

    x_nchw: (N, C_in, H, W); w0: (C0, C_in, 1, 1); w1: (C1, C_in, 1, 1);
    gamma/beta: (C0+C1,).  Returns (N, C0+C1, H//2, W//2) in x_nchw.dtype.
    """
    N, C_in, H, W = x_nchw.shape
    # TODO(synk): odd H/W would need the ConstantPad2d path; NAS-Bench-201
    # only uses even spatial extents (32 -> 16 -> 8), so we assert even.
    assert H % 2 == 0 and W % 2 == 0
    C0, C1 = w0.shape[0], w1.shape[0]
    C_out = C0 + C1
    Ho, Wo = H // 2, W // 2
    S = Ho * Wo
    L = N * S                       # batch folded into the lane axis
    K = 2 * C_in

    # Stride-2 even/odd taps (ReLU commutes with subsampling, so it moves
    # inside the kernel), then fold batch into the lane axis: (K, N*S).
    # TODO(synk): for ImageNet-sized H*W, extract the taps in-kernel instead of
    # materializing xcat in HBM (saves one full HBM round-trip).
    xe = x_nchw[:, :, 0::2, 0::2].reshape(N, C_in, S)    # conv0 taps
    xo = x_nchw[:, :, 1::2, 1::2].reshape(N, C_in, S)    # conv1 taps (+1,+1)
    xcat = jnp.concatenate(
        [jnp.transpose(xe, (1, 0, 2)).reshape(C_in, L),
         jnp.transpose(xo, (1, 0, 2)).reshape(C_in, L)], axis=0)   # (K, L)

    # Fused block-diagonal weight: rows [:C0] read even taps, rows [C0:] odd.
    wm = jnp.zeros((C_out, K), jnp.float32)
    wm = wm.at[:C0, :C_in].set(w0[:, :, 0, 0].astype(jnp.float32))
    wm = wm.at[C0:, C_in:].set(w1[:, :, 0, 0].astype(jnp.float32))

    in_bytes = jnp.dtype(xcat.dtype).itemsize
    out_bytes = jnp.dtype(x_nchw.dtype).itemsize
    TS = spatial_tile if spatial_tile is not None else _pick_spatial_tile(
        L, K * in_bytes + C_out * out_bytes)
    nt = pl.cdiv(L, TS)
    grid = (nt,)

    x_spec = pl.BlockSpec((K, TS), lambda j: (0, j))
    w_spec = pl.BlockSpec((C_out, K), lambda j: (0, 0))       # VMEM-resident
    vec_spec = pl.BlockSpec((C_out, 1), lambda j: (0, 0))     # VMEM-resident
    part_spec = pl.BlockSpec((1, C_out, 1), lambda j: (j, 0, 0))
    params = pltpu.CompilerParams(dimension_semantics=("parallel",),
                                  vmem_limit_bytes=32 * 1024 * 1024)

    # ---- Pass 1: per-tile partial batch statistics (megacore-friendly). ----
    psum, psq = pl.pallas_call(
        functools.partial(_stats_kernel, L=L, TS=TS),
        grid=grid,
        in_specs=[x_spec, w_spec],
        out_specs=[part_spec, part_spec],
        out_shape=[jax.ShapeDtypeStruct((nt, C_out, 1), jnp.float32)] * 2,
        compiler_params=params,
    )(xcat, wm)

    # Fold training-mode BatchNorm into per-channel scale/shift (tiny XLA
    # math) and bake the scale directly into the matmul weight for pass 2.
    # NOTE: var = E[y^2] - mean^2 in f32 can lose precision when |mean| >> std;
    # acceptable at NAS-Bench-201 scales (rtol ~1e-4 vs the centered reference).
    cnt = jnp.float32(L)
    s = jnp.sum(psum, axis=0)                        # (C_out, 1)
    sq = jnp.sum(psq, axis=0)
    mean = s / cnt
    var = jnp.maximum(sq / cnt - mean * mean, 0.0)   # biased batch variance
    inv = jax.lax.rsqrt(var + eps)
    scale = gamma.reshape(C_out, 1).astype(jnp.float32) * inv
    shift = beta.reshape(C_out, 1).astype(jnp.float32) - mean * scale
    wm_scaled = wm * scale                           # fold BN scale into W
    # TODO(synk): running_mean/running_var momentum updates of BatchNorm2d are
    # a training side effect and do not affect the returned tensor; omitted.

    # ---- Pass 2: y = W' @ relu(x) + shift, lane-dense stores. ----
    out = pl.pallas_call(
        _norm_kernel,
        grid=grid,
        in_specs=[x_spec, w_spec, vec_spec],
        out_specs=pl.BlockSpec((C_out, TS), lambda j: (0, j)),
        out_shape=jax.ShapeDtypeStruct((C_out, L), x_nchw.dtype),
        compiler_params=params,
    )(xcat, wm_scaled, shift)

    # (C_out, N*S) -> NCHW
    return jnp.transpose(out.reshape(C_out, N, Ho, Wo), (1, 0, 2, 3))


def reference_nchw(x, w0, w1, gamma, beta, eps=1e-5):
    """Pure-JAX reference mirroring the PyTorch forward (training-mode BN)."""
    x = jax.nn.relu(x)
    xe = x[:, :, 0::2, 0::2]
    xo = x[:, :, 1::2, 1::2]
    y0 = jnp.einsum("nchw,oc->nohw", xe, w0[:, :, 0, 0])
    y1 = jnp.einsum("nchw,oc->nohw", xo, w1[:, :, 0, 0])
    y = jnp.concatenate([y0, y1], axis=1)
    mean = y.mean(axis=(0, 2, 3), keepdims=True)
    var = ((y - mean) ** 2).mean(axis=(0, 2, 3), keepdims=True)
    return ((y - mean) / jnp.sqrt(var + eps)) * gamma.reshape(1, -1, 1, 1) \
        + beta.reshape(1, -1, 1, 1)


if __name__ == "__main__":
    key = jax.random.PRNGKey(0)

    def make_inputs(k, N, C_in, C_out, H, W):
        C0, C1 = C_out // 2, C_out - C_out // 2
        k1, k2, k3, k4, k5 = jax.random.split(k, 5)
        x = jax.random.normal(k1, (N, C_in, H, W), jnp.float32)
        w0 = 0.1 * jax.random.normal(k2, (C0, C_in, 1, 1), jnp.float32)
        w1 = 0.1 * jax.random.normal(k3, (C1, C_in, 1, 1), jnp.float32)
        gamma = 1.0 + 0.1 * jax.random.normal(k4, (C_out,), jnp.float32)
        beta = 0.1 * jax.random.normal(k5, (C_out,), jnp.float32)
        return x, w0, w1, gamma, beta

    k1, k2 = jax.random.split(key)

    # Check 1: module-consistent small shapes (N=2, C_in=4, H=W=16, C_out=8).
    args = make_inputs(k1, 2, 4, 8, 16, 16)
    out = jax.block_until_ready(factorized_reduce(*args))
    ref = reference_nchw(*args)
    np.testing.assert_allclose(np.asarray(out), np.asarray(ref),
                               rtol=1e-4, atol=1e-4)

    # Check 2: force a 128-column tile so N*Ho*Wo = 162 is NOT a multiple of
    # the tile -> exercises the masked / out-of-bounds tail-tile path that the
    # review flagged.
    args2 = make_inputs(k2, 2, 4, 8, 18, 18)
    out2 = jax.block_until_ready(factorized_reduce(*args2, spatial_tile=128))
    ref2 = reference_nchw(*args2)
    np.testing.assert_allclose(np.asarray(out2), np.asarray(ref2),
                               rtol=1e-4, atol=1e-4)

    print("KERNEL_OK")
</pallas_src>

<mosaic_0001>
module attributes {stable_mosaic.version = 11 : i64} {
  func.func @_stats_kernel(%arg0: i32, %arg1: memref<8x128xf32, #tpu.memory_space<vmem>>, %arg2: memref<8x8xf32, #tpu.memory_space<vmem>>, %arg3: memref<1x8x1xf32, #tpu.memory_space<vmem>>, %arg4: memref<1x8x1xf32, #tpu.memory_space<vmem>>) attributes {dimension_semantics = [#tpu.dimension_semantics<parallel>], iteration_bounds = array<i64: 1>, scalar_prefetch = 0 : i64, scratch_operands = 0 : i64, tpu.core_type = #tpu.core_type<tc>, window_params = [{transform_indices = @transform_0, window_bounds = array<i64: 8, 128>}, {pipeline_mode = #tpu.pipeline_mode<synchronous>, transform_indices = @transform_1, window_bounds = array<i64: 8, 8>}, {transform_indices = @transform_2, window_bounds = array<i64: 1, 8, 1>}, {transform_indices = @transform_3, window_bounds = array<i64: 1, 8, 1>}]} {
    %c0 = arith.constant 0 : index
    %c0_0 = arith.constant 0 : index
    %0 = vector.load %arg1[%c0, %c0_0] : memref<8x128xf32, #tpu.memory_space<vmem>>, vector<8x128xf32>
    %cst = arith.constant 0.000000e+00 : f32
    %1 = vector.broadcast %cst : f32 to vector<8x128xf32>
    %2 = arith.maximumf %0, %1 : vector<8x128xf32>
    %c0_1 = arith.constant 0 : index
    %c0_2 = arith.constant 0 : index
    %3 = vector.load %arg2[%c0_1, %c0_2] : memref<8x8xf32, #tpu.memory_space<vmem>>, vector<8x8xf32>
    %cst_3 = arith.constant dense<0.000000e+00> : vector<8x128xf32>
    %4 = tpu.matmul %3, %2, %cst_3 {dimension_numbers = #tpu.dot_dimension_numbers<[1], [0], [0], [1], [0, 0, 1, 1], [], []>} : vector<8x8xf32>, vector<8x128xf32>, vector<8x128xf32> -> vector<8x128xf32>
    %cst_4 = arith.constant dense<0.000000e+00> : vector<8xf32>
    %5 = vector.multi_reduction <add>, %4, %cst_4 [1] : vector<8x128xf32> to vector<8xf32>
    %6 = vector.shape_cast %5 : vector<8xf32> to vector<8x1xf32>
    %c0_5 = arith.constant 0 : index
    %c0_6 = arith.constant 0 : index
    %c0_7 = arith.constant 0 : index
    %7 = vector.load %arg3[%c0_5, %c0_6, %c0_7] : memref<1x8x1xf32, #tpu.memory_space<vmem>>, vector<1x8x1xf32>
    %8 = vector.shape_cast %7 : vector<1x8x1xf32> to vector<8x1xf32>
    %9 = vector.shape_cast %6 : vector<8x1xf32> to vector<1x8x1xf32>
    tpu.vector_store %arg3[%c0_5, %c0_6, %c0_7], %9 {strides = array<i32>} : memref<1x8x1xf32, #tpu.memory_space<vmem>>, vector<1x8x1xf32>,
    %10 = arith.mulf %4, %4 : vector<8x128xf32>
    %cst_8 = arith.constant dense<0.000000e+00> : vector<8xf32>
    %11 = vector.multi_reduction <add>, %10, %cst_8 [1] : vector<8x128xf32> to vector<8xf32>
    %12 = vector.shape_cast %11 : vector<8xf32> to vector<8x1xf32>
    %c0_9 = arith.constant 0 : index
    %c0_10 = arith.constant 0 : index
    %c0_11 = arith.constant 0 : index
    %13 = vector.load %arg4[%c0_9, %c0_10, %c0_11] : memref<1x8x1xf32, #tpu.memory_space<vmem>>, vector<1x8x1xf32>
    %14 = vector.shape_cast %13 : vector<1x8x1xf32> to vector<8x1xf32>
    %15 = vector.shape_cast %12 : vector<8x1xf32> to vector<1x8x1xf32>
    tpu.vector_store %arg4[%c0_9, %c0_10, %c0_11], %15 {strides = array<i32>} : memref<1x8x1xf32, #tpu.memory_space<vmem>>, vector<1x8x1xf32>,
    return
  }
  func.func @transform_0(%arg0: i32) -> (i32, i32) {
    %c0_i32 = arith.constant 0 : i32
    %c0_i32_0 = arith.constant 0 : i32
    return %c0_i32, %arg0 : i32, i32
  }
  func.func @transform_1(%arg0: i32) -> (i32, i32) {
    %c0_i32 = arith.constant 0 : i32
    %c0_i32_0 = arith.constant 0 : i32
    %c0_i32_1 = arith.constant 0 : i32
    return %c0_i32, %c0_i32_0 : i32, i32
  }
  func.func @transform_2(%arg0: i32) -> (i32, i32, i32) {
    %c0_i32 = arith.constant 0 : i32
    %c0_i32_0 = arith.constant 0 : i32
    %c0_i32_1 = arith.constant 0 : i32
    return %arg0, %c0_i32, %c0_i32_0 : i32, i32, i32
  }
  func.func @transform_3(%arg0: i32) -> (i32, i32, i32) {
    %c0_i32 = arith.constant 0 : i32
    %c0_i32_0 = arith.constant 0 : i32
    %c0_i32_1 = arith.constant 0 : i32
    return %arg0, %c0_i32, %c0_i32_0 : i32, i32, i32
  }
}

</mosaic_0001>

<llo_original>
// kernel: tpu_custom_call.1
$region0: #{tpu_custom_call.1}
  #allocation0 [shape = 'u32[]', space=smem, size = 0x4, offset = 0x4, fixed_abs, tag = 'smem constant byte address 0x4 - core index']
  #allocation1 [shape = 'u32[144,128]{1,0:T(1,128)}', space=vmem, size = 0x12000, scoped, tag = 'internal scratch']
  %s0 = inlined_call_operand.hbm [shape: f32[8,128], index: 0, kind: input, shape index: {}]
  %s1 = inlined_call_operand.hbm [shape: f32[8,8], index: 1, kind: input, shape index: {}]
  %s2 = inlined_call_operand.vmem [shape: f32[1,8,1], index: 2, kind: output, shape index: {0}]
  %s3 = inlined_call_operand.vmem [shape: f32[1,8,1], index: 3, kind: output, shape index: {1}]
  %4 = xla_tuple %s2, %s3
  %s5 = sld [smem:[#allocation0]]
  $region34: #{tpu_custom_call.1} parent=0
    _
  %s7 = ssub.s32 1, %s5
  %s8 = scalar_select 0, %s7, %s5
  $region1: #{tpu_custom_call.1} parent=0
    #allocation2 [shape = 'u8[4096]{0}', space=vmem, size = 0x1000, scoped, tag = 'input window, operand 0, single buffered']
    #allocation3 [shape = 's32[1]{0}', space=sflag, size = 0x4, scoped, tag = 'scoped memory for tpu_custom_call.1']
    #allocation4 [shape = 'u8[4096]{0}', space=vmem, size = 0x1000, scoped, tag = 'input window, operand 1, single buffered']
    #allocation5 [shape = 's32[1]{0}', space=sflag, size = 0x4, scoped, tag = 'scoped memory for tpu_custom_call.1']
    %9 = vsyncpa [#allocation3], 0
    %10 = vsyncpa [#allocation5], 0
    // Predicated region
    $region2: #{tpu_custom_call.1} parent=1 // pred_check
      _
    $region3: #{tpu_custom_call.1} parent=1 // pred_check_branch
      %12 = sbr.rel (0) target = $region5
    $region4: #{tpu_custom_call.1} parent=1 // pred_region
      %s14 = ssub.s32 128, 128
      %15 = vsyncadd [#allocation3], %s14
      %s17 = sshll.u32 [#allocation2], 4
      %s18 = int_to_ptr.vmem [resolvable:$true] %s17
      %20 = dma.hbm_to_vmem [thread:$0]  %s0, 128, %s18, [#allocation3]
    $region5: #{tpu_custom_call.1} parent=1 // pred_fallthru
      _
    // Predicated region
    $region6: #{tpu_custom_call.1} parent=1 // pred_check
      _
    $region7: #{tpu_custom_call.1} parent=1 // pred_check_branch
      %22 = sbr.rel (0) target = $region9
    $region8: #{tpu_custom_call.1} parent=1 // pred_region
      %s24 = ssub.s32 128, 128
      %25 = vsyncadd [#allocation5], %s24
      %s27 = sshll.u32 [#allocation4], 4
      %s28 = int_to_ptr.vmem [resolvable:$true] %s27
      %30 = dma.hbm_to_vmem [thread:$0]  %s1, 128, %s28, [#allocation5]
    $region9: #{tpu_custom_call.1} parent=1 // pred_fallthru
      _
    // Predicated region
    $region10: #{tpu_custom_call.1} parent=1 // pred_check
      _
    $region11: #{tpu_custom_call.1} parent=1 // pred_check_branch
      %32 = sbr.rel (0) target = $region13
    $region12: #{tpu_custom_call.1} parent=1 // pred_region
      %33 = dma.done [#allocation3], 128
    $region13: #{tpu_custom_call.1} parent=1 // pred_fallthru
      _
    // Predicated region
    $region14: #{tpu_custom_call.1} parent=1 // pred_check
      _
    $region15: #{tpu_custom_call.1} parent=1 // pred_check_branch
      %35 = sbr.rel (0) target = $region17
    $region16: #{tpu_custom_call.1} parent=1 // pred_region
      %36 = dma.done [#allocation5], 128
    $region17: #{tpu_custom_call.1} parent=1 // pred_fallthru
      _
    %v37 = vld [vmem:[#allocation2] sm:$0xff]
    %v38 = vmax.f32 %v37, 0.0
    %v39 = vld [vmem:[#allocation4] sm:$0xff]
    %vm40 = vcmask 64512
    %v42 = vsel %vm40, %v39, 0
    %44 = vmatprep.subr.mxu0 0.0
    %45 = vmatpush1.msra.mxu0 %v38
    %46 = vmatprep.subr.mxu0 0.0
    %47 = vmatpush1.msra.mxu0 0.0
    %48 = vmatprep.subr.mxu0 0.0
    %49 = vmatpush1.msra.mxu0 0.0
    %50 = vmatprep.subr.mxu0 0.0
    %51 = vmatpush1.msra.mxu0 0.0
    %52 = vmatprep.subr.mxu0 0.0
    %53 = vmatpush1.msra.mxu0 0.0
    %54 = vmatprep.subr.mxu0 0.0
    %55 = vmatpush1.msra.mxu0 0.0
    %56 = vmatprep.subr.mxu0 0.0
    %57 = vmatpush1.msra.mxu0 0.0
    %58 = vmatprep.subr.mxu0 0.0
    %59 = vmatpush1.msra.mxu0 0.0
    %60 = vmatprep.subr.mxu0 0.0
    %61 = vmatpush1.msra.mxu0 0.0
    %62 = vmatprep.subr.mxu0 0.0
    %63 = vmatpush1.msra.mxu0 0.0
    %64 = vmatprep.subr.mxu0 0.0
    %65 = vmatpush1.msra.mxu0 0.0
    %66 = vmatprep.subr.mxu0 0.0
    %67 = vmatpush1.msra.mxu0 0.0
    %68 = vmatprep.subr.mxu0 0.0
    %69 = vmatpush1.msra.mxu0 0.0
    %70 = vmatprep.subr.mxu0 0.0
    %71 = vmatpush1.msra.mxu0 0.0
    %72 = vmatprep.subr.mxu0 0.0
    %73 = vmatpush1.msra.mxu0 0.0
    %74 = vmatprep.subr.mxu0 0.0
    %75 = vmatpush1.msra.mxu0 0.0
    %76 = vmatprep.subr.mxu0 0.0
    %77 = vmatpush1.msra.mxu0 0.0
    %78 = vmatprep.subr.mxu0 0.0
    %79 = vmatpush1.msra.mxu0 0.0
    %80 = vmatprep.subr.mxu0 0.0
    %81 = vmatpush1.msra.mxu0 0.0
    %82 = vmatprep.subr.mxu0 0.0
    %83 = vmatpush1.msra.mxu0 0.0
    %84 = vmatprep.subr.mxu0 0.0
    %85 = vmatpush1.msra.mxu0 0.0
    %86 = vmatprep.subr.mxu0 0.0
    %87 = vmatpush1.msra.mxu0 0.0
    %88 = vmatprep.subr.mxu0 0.0
    %89 = vmatpush1.msra.mxu0 0.0
    %90 = vmatprep.subr.mxu0 0.0
    %91 = vmatpush1.msra.mxu0 0.0
    %92 = vmatprep.subr.mxu0 0.0
    %93 = vmatpush1.msra.mxu0 0.0
    %94 = vmatprep.subr.mxu0 0.0
    %95 = vmatpush1.msra.mxu0 0.0
    %96 = vmatprep.subr.mxu0 0.0
    %97 = vmatpush1.msra.mxu0 0.0
    %98 = vmatprep.subr.mxu0 0.0
    %99 = vmatpush1.msra.mxu0 0.0
    %100 = vmatprep.subr.mxu0 0.0
    %101 = vmatpush1.msra.mxu0 0.0
    %102 = vmatprep.subr.mxu0 0.0
    %103 = vmatpush1.msra.mxu0 0.0
    %104 = vmatprep.subr.mxu0 0.0
    %105 = vmatpush1.msra.mxu0 0.0
    %106 = vmatprep.subr.mxu0 0.0
    %107 = vmatpush1.msra.mxu0 0.0
    %108 = vmatprep.mubr.f32.mxu0 0.0
    %109 = vmatmul.mubr.f32.gmra.mrb[0].mxu0 %v42
    %v110 = vpop.f32.mrb[0].mxu0
    %v111 = vadd.f32 0.0, %v110
    %v112 = vpop.f32.mrb[0].mxu0
    %113 = vdwg.mxu0
    %114 = vadd.xlane.f32.xlu0 %v111
    %v115 = vpop.xlane.xlu0 %114
    %vm116 = vcmask 7168
    %117 = vst.msk [vmem:[%s2] sm:$0xff] %vm116, %v115
    %v118 = vmul.f32 %v111, %v111
    %119 = vadd.xlane.f32.xlu0 %v118
    %v120 = vpop.xlane.xlu0 %119
    %121 = vst.msk [vmem:[%s3] sm:$0xff] %vm116, %v120
    // Predicated region
    $region18: #{tpu_custom_call.1} parent=1 // pred_check
      _
    $region19: #{tpu_custom_call.1} parent=1 // pred_check_branch
      %123 = sbr.rel (0) target = $region21
    $region20: #{tpu_custom_call.1} parent=1 // pred_region
      _
    $region21: #{tpu_custom_call.1} parent=1 // pred_fallthru
      _
    // Predicated region
    $region22: #{tpu_custom_call.1} parent=1 // pred_check
      _
    $region23: #{tpu_custom_call.1} parent=1 // pred_check_branch
      %125 = sbr.rel (0) target = $region25
    $region24: #{tpu_custom_call.1} parent=1 // pred_region
      _
    $region25: #{tpu_custom_call.1} parent=1 // pred_fallthru
      _
    // Predicated region
    $region26: #{tpu_custom_call.1} parent=1 // pred_check
      _
    $region27: #{tpu_custom_call.1} parent=1 // pred_check_branch
      %127 = sbr.rel (0) target = $region29
    $region28: #{tpu_custom_call.1} parent=1 // pred_region
      _
    $region29: #{tpu_custom_call.1} parent=1 // pred_fallthru
      _
    // Predicated region
    $region30: #{tpu_custom_call.1} parent=1 // pred_check
      _
    $region31: #{tpu_custom_call.1} parent=1 // pred_check_branch
      %129 = sbr.rel (0) target = $region33
    $region32: #{tpu_custom_call.1} parent=1 // pred_region
      _
    $region33: #{tpu_custom_call.1} parent=1 // pred_fallthru
      _
    %130 = vsyncpa [#allocation3], 1
    %131 = vsyncpa [#allocation5], 1

</llo_original>
